<compile_context>
chip_gen: v7x
topology: tpu7x:2x2x1
jax: 0.10.0
libtpu: 0.0.40
codegen_flags: <defaults>
</compile_context>

<pallas_src>
import functools

import jax
import jax.numpy as jnp
from jax.experimental import pallas as pl
from jax.experimental.pallas import tpu as pltpu


def _sublane_multiple(itemsize):
    # Native sublane tile: 8 rows for 4-byte dtypes, 16 for 2-byte, 32 for 1-byte.
    return 8 * max(1, 4 // itemsize)


def _vmem_limit_bytes():
    """Generation-aware scoped-VMEM limit (v5e/v6e: 128 MiB phys, v7x: 64 MiB)."""
    cap = None
    try:
        info = pltpu.get_tpu_info()
        cap = getattr(info, "vmem_capacity_bytes", None)
    except Exception:
        cap = None
    if not cap:
        cap = 64 * 1024 * 1024            # assume the smallest-VMEM generation (v7x)
    limit = (cap * 3) // 4                # leave headroom for compiler internals
    return int(min(max(limit, 32 * 1024 * 1024), 100 * 1024 * 1024))


def _choose_tile_n(n, c, d, x_itemsize, out_itemsize, wt_bytes, vmem_limit):
    """Largest divisor of n whose per-step working set fits the VMEM budget.

    tile_n must be a multiple of the output dtype's native sublane tile (or
    equal n) so the (tile_n, d) output block stores sublane/lane-dense.
    """
    out_mult = _sublane_multiple(out_itemsize)
    x_sub = _sublane_multiple(x_itemsize)
    pad_c = -(-c // x_sub) * x_sub        # sublane padding of the x block's c dim
    d_pad = -(-d // 128) * 128            # lane padding of VMEM buffers
    budget = vmem_limit - wt_bytes - 6 * 1024 * 1024   # resident W^T + headroom
    budget = max(budget, 1 << 20)

    def cost(tn):
        return (2 * tn * pad_c * d_pad * x_itemsize       # x block, double-buffered
                + 2 * tn * d_pad * out_itemsize            # out block, double-buffered
                + c * tn * d_pad * (4 + x_itemsize + 2)    # logits + x slices + bf16 copies
                + 6 * tn * d_pad * 4)                      # max/exp/denom/acc f32 live set

    valid = [tn for tn in range(1, n + 1)
             if n % tn == 0 and (tn == n or tn % out_mult == 0)]
    fitting = [tn for tn in valid if cost(tn) <= budget]
    return max(fitting) if fitting else min(valid)


def _attn_pool_kernel(x_ref, wt_ref, o_ref, *, chunk_size):
    # x_ref : (tn, c, d)  x tile (the c dim is sublane-padded in VMEM, but every
    #                     compute value below is a dense (tn, d) tile)
    # wt_ref: (d, d)      W^T, one resident copy in VMEM for the whole grid
    # o_ref : (tn, d)     output tile
    c = chunk_size
    wt = wt_ref[...]

    # Dense (tn, d) slices of the tile, one per chunk element.
    xs = [x_ref[:, k, :] for k in range(c)]

    # Linear logits per chunk element on the MXU (f32 accumulation), plus the
    # running per-(n, d) max over the chunk axis for a stable softmax.
    logits = []
    m = None
    for k in range(c):
        lk = jnp.dot(xs[k].astype(wt.dtype), wt,
                     preferred_element_type=jnp.float32)
        logits.append(lk)
        m = lk if m is None else jnp.maximum(m, lk)

    # Softmax numerator folded straight into the pooled sum; normalization is
    # deferred to a single (tn, d) multiply after the chunk reduction.
    denom = None
    acc = None
    for k in range(c):
        e = jnp.exp(logits[k] - m)
        w = xs[k].astype(jnp.float32) * e
        denom = e if denom is None else denom + e
        acc = w if acc is None else acc + w

    o_ref[...] = (acc * pl.reciprocal(denom, approx=True)).astype(o_ref.dtype)


def attention_pool(x, weight, bias, chunk_size, *, tile_n=None,
                   use_bf16_matmul=True):
    """Pallas AttentionPool forward.

    x:      (b, seq, d) with seq % chunk_size == 0
    weight: (d, d) torch nn.Linear layout (out_features, in_features)
    bias:   (d,)  accepted for API parity but unused (see below)
    """
    b, seq, d = x.shape
    c = chunk_size
    assert seq % c == 0, "sequence length must be a multiple of chunk_size"
    n = seq // c

    # The Linear bias is mathematically redundant: softmax over the chunk axis
    # cancels any per-feature additive constant, so it never affects the output.
    del bias

    # Matmul operand dtype (accumulation is always f32 via preferred_element_type).
    if use_bf16_matmul or x.dtype == jnp.bfloat16:
        mm_dtype = jnp.bfloat16
    else:
        mm_dtype = x.dtype
    wt = weight.T.astype(mm_dtype)                 # kernel computes x @ W^T

    vmem_limit = _vmem_limit_bytes()
    wt_bytes = wt.size * wt.dtype.itemsize
    if tile_n is None:
        tile_n = _choose_tile_n(n, c, d, x.dtype.itemsize, x.dtype.itemsize,
                                wt_bytes, vmem_limit)
    out_mult = _sublane_multiple(x.dtype.itemsize)
    assert n % tile_n == 0 and (tile_n == n or tile_n % out_mult == 0), (
        "tile_n must divide n and be a multiple of the dtype sublane tile "
        "(or equal n)")
    n_tiles = n // tile_n

    x4 = x.reshape(b, n, c, d)                     # free (contiguous) view

    kernel = functools.partial(_attn_pool_kernel, chunk_size=c)
    flops = 2 * b * seq * d * d + 8 * b * seq * d
    bytes_accessed = (x.size * x.dtype.itemsize + wt_bytes
                      + b * n * d * x.dtype.itemsize)

    return pl.pallas_call(
        kernel,
        out_shape=jax.ShapeDtypeStruct((b, n, d), x.dtype),
        grid_spec=pltpu.PrefetchScalarGridSpec(
            num_scalar_prefetch=0,
            grid=(b, n_tiles),
            in_specs=[
                # x tile: (tn, c, d) slab of the (b, n, c, d) view, pipelined.
                pl.BlockSpec((None, tile_n, c, d), lambda i, j: (i, j, 0, 0)),
                # W^T: whole array resident in VMEM once (no double-buffering).
                pl.BlockSpec(memory_space=pltpu.MemorySpace.VMEM),
            ],
            out_specs=pl.BlockSpec((None, tile_n, d), lambda i, j: (i, j, 0)),
        ),
        compiler_params=pltpu.CompilerParams(
            dimension_semantics=("parallel", "parallel"),
            vmem_limit_bytes=vmem_limit,
        ),
        cost_estimate=pl.CostEstimate(
            flops=flops,
            transcendentals=b * seq * d,
            bytes_accessed=bytes_accessed,
        ),
    )(x4, wt)


def attention_pool_ref(x, weight, bias, chunk_size):
    b, seq, d = x.shape
    n = seq // chunk_size
    x4 = x.reshape(b, n, chunk_size, d)
    logits = jnp.einsum("bncd,ed->bnce", x4, weight) + bias
    attn = jax.nn.softmax(logits, axis=-2)
    return jnp.sum(x4 * attn, axis=-2)


if __name__ == "__main__":
    key = jax.random.PRNGKey(0)
    k_x, k_w, k_b, k_x2 = jax.random.split(key, 4)

    # --- test 1: f32 matmul path, single n-tile per batch element -----------
    batch, dim, chunk_size, n_chunks = 2, 32, 4, 8
    seq = chunk_size * n_chunks
    x = jax.random.normal(k_x, (batch, seq, dim), dtype=jnp.float32)
    # Parameters of nn.Linear(dim, dim). The module zero-inits them; use small
    # deterministic random values so the matmul / softmax paths are exercised.
    weight = 0.1 * jax.random.normal(k_w, (dim, dim), dtype=jnp.float32)
    bias = 0.1 * jax.random.normal(k_b, (dim,), dtype=jnp.float32)

    out = jax.block_until_ready(
        attention_pool(x, weight, bias, chunk_size, use_bf16_matmul=False))
    ref = attention_pool_ref(x, weight, bias, chunk_size)
    assert out.shape == (batch, n_chunks, dim)
    # only the approximate EUP reciprocal separates this path from the reference
    assert jnp.allclose(out, ref, atol=5e-3, rtol=5e-3), "mismatch (test 1)"

    # --- test 2: default bf16-matmul path, multi-tile grid over n -----------
    chunk_size2, n_chunks2 = 2, 16
    seq2 = chunk_size2 * n_chunks2
    x2 = jax.random.normal(k_x2, (batch, seq2, dim), dtype=jnp.float32)
    out2 = jax.block_until_ready(
        attention_pool(x2, weight, bias, chunk_size2, tile_n=8))
    ref2 = attention_pool_ref(x2, weight, bias, chunk_size2)
    assert out2.shape == (batch, n_chunks2, dim)
    # bf16 matmul operands (f32 accumulation) -> slightly looser tolerance
    assert jnp.allclose(out2, ref2, atol=2e-2, rtol=2e-2), "mismatch (test 2)"

    print("KERNEL_OK")
</pallas_src>

<mosaic_0001>
module attributes {stable_mosaic.version = 11 : i64} {
  func.func @_attn_pool_kernel(%arg0: i32, %arg1: i32, %arg2: memref<1x8x4x32xf32, #tpu.memory_space<vmem>>, %arg3: memref<32x32xf32, #tpu.memory_space<vmem>>, %arg4: memref<1x8x32xf32, #tpu.memory_space<vmem>>) attributes {dimension_semantics = [#tpu.dimension_semantics<parallel>, #tpu.dimension_semantics<parallel>], iteration_bounds = array<i64: 2, 1>, scalar_prefetch = 0 : i64, scratch_operands = 0 : i64, tpu.core_type = #tpu.core_type<tc>, window_params = [{transform_indices = @transform_0, window_bounds = array<i64: 1, 8, 4, 32>}, {pipeline_mode = #tpu.pipeline_mode<synchronous>, transform_indices = @transform_1, window_bounds = array<i64: 32, 32>}, {transform_indices = @transform_2, window_bounds = array<i64: 1, 8, 32>}]} {
    %c0 = arith.constant 0 : index
    %c0_0 = arith.constant 0 : index
    %0 = vector.load %arg3[%c0, %c0_0] : memref<32x32xf32, #tpu.memory_space<vmem>>, vector<32x32xf32>
    %c0_1 = arith.constant 0 : index
    %c0_2 = arith.constant 0 : index
    %c0_3 = arith.constant 0 : index
    %c0_4 = arith.constant 0 : index
    %1 = vector.load %arg2[%c0_1, %c0_2, %c0_3, %c0_4] : memref<1x8x4x32xf32, #tpu.memory_space<vmem>>, vector<1x8x1x32xf32>
    %2 = vector.shape_cast %1 : vector<1x8x1x32xf32> to vector<8x32xf32>
    %c0_5 = arith.constant 0 : index
    %c0_6 = arith.constant 0 : index
    %c1 = arith.constant 1 : index
    %c0_7 = arith.constant 0 : index
    %3 = vector.load %arg2[%c0_5, %c0_6, %c1, %c0_7] : memref<1x8x4x32xf32, #tpu.memory_space<vmem>>, vector<1x8x1x32xf32>
    %4 = vector.shape_cast %3 : vector<1x8x1x32xf32> to vector<8x32xf32>
    %c0_8 = arith.constant 0 : index
    %c0_9 = arith.constant 0 : index
    %c2 = arith.constant 2 : index
    %c0_10 = arith.constant 0 : index
    %5 = vector.load %arg2[%c0_8, %c0_9, %c2, %c0_10] : memref<1x8x4x32xf32, #tpu.memory_space<vmem>>, vector<1x8x1x32xf32>
    %6 = vector.shape_cast %5 : vector<1x8x1x32xf32> to vector<8x32xf32>
    %c0_11 = arith.constant 0 : index
    %c0_12 = arith.constant 0 : index
    %c3 = arith.constant 3 : index
    %c0_13 = arith.constant 0 : index
    %7 = vector.load %arg2[%c0_11, %c0_12, %c3, %c0_13] : memref<1x8x4x32xf32, #tpu.memory_space<vmem>>, vector<1x8x1x32xf32>
    %8 = vector.shape_cast %7 : vector<1x8x1x32xf32> to vector<8x32xf32>
    %cst = arith.constant dense<0.000000e+00> : vector<8x32xf32>
    %9 = tpu.matmul %2, %0, %cst {dimension_numbers = #tpu.dot_dimension_numbers<[1], [0], [0], [1], [0, 0, 1, 1], [], []>} : vector<8x32xf32>, vector<32x32xf32>, vector<8x32xf32> -> vector<8x32xf32>
    %cst_14 = arith.constant dense<0.000000e+00> : vector<8x32xf32>
    %10 = tpu.matmul %4, %0, %cst_14 {dimension_numbers = #tpu.dot_dimension_numbers<[1], [0], [0], [1], [0, 0, 1, 1], [], []>} : vector<8x32xf32>, vector<32x32xf32>, vector<8x32xf32> -> vector<8x32xf32>
    %11 = arith.maximumf %9, %10 : vector<8x32xf32>
    %cst_15 = arith.constant dense<0.000000e+00> : vector<8x32xf32>
    %12 = tpu.matmul %6, %0, %cst_15 {dimension_numbers = #tpu.dot_dimension_numbers<[1], [0], [0], [1], [0, 0, 1, 1], [], []>} : vector<8x32xf32>, vector<32x32xf32>, vector<8x32xf32> -> vector<8x32xf32>
    %13 = arith.maximumf %11, %12 : vector<8x32xf32>
    %cst_16 = arith.constant dense<0.000000e+00> : vector<8x32xf32>
    %14 = tpu.matmul %8, %0, %cst_16 {dimension_numbers = #tpu.dot_dimension_numbers<[1], [0], [0], [1], [0, 0, 1, 1], [], []>} : vector<8x32xf32>, vector<32x32xf32>, vector<8x32xf32> -> vector<8x32xf32>
    %15 = arith.maximumf %13, %14 : vector<8x32xf32>
    %16 = arith.subf %9, %15 : vector<8x32xf32>
    %17 = math.exp %16 : vector<8x32xf32>
    %18 = arith.mulf %2, %17 : vector<8x32xf32>
    %19 = arith.subf %10, %15 : vector<8x32xf32>
    %20 = math.exp %19 : vector<8x32xf32>
    %21 = arith.mulf %4, %20 : vector<8x32xf32>
    %22 = arith.addf %17, %20 : vector<8x32xf32>
    %23 = arith.addf %18, %21 : vector<8x32xf32>
    %24 = arith.subf %12, %15 : vector<8x32xf32>
    %25 = math.exp %24 : vector<8x32xf32>
    %26 = arith.mulf %6, %25 : vector<8x32xf32>
    %27 = arith.addf %22, %25 : vector<8x32xf32>
    %28 = arith.addf %23, %26 : vector<8x32xf32>
    %29 = arith.subf %14, %15 : vector<8x32xf32>
    %30 = math.exp %29 : vector<8x32xf32>
    %31 = arith.mulf %8, %30 : vector<8x32xf32>
    %32 = arith.addf %27, %30 : vector<8x32xf32>
    %33 = arith.addf %28, %31 : vector<8x32xf32>
    %34 = tpu.reciprocal %32 {approx = true} : vector<8x32xf32> -> vector<8x32xf32>
    %35 = arith.mulf %33, %34 : vector<8x32xf32>
    %c0_17 = arith.constant 0 : index
    %c0_18 = arith.constant 0 : index
    %c0_19 = arith.constant 0 : index
    %36 = vector.load %arg4[%c0_17, %c0_18, %c0_19] : memref<1x8x32xf32, #tpu.memory_space<vmem>>, vector<1x8x32xf32>
    %37 = vector.shape_cast %36 : vector<1x8x32xf32> to vector<8x32xf32>
    %38 = vector.shape_cast %35 : vector<8x32xf32> to vector<1x8x32xf32>
    tpu.vector_store %arg4[%c0_17, %c0_18, %c0_19], %38 {strides = array<i32>} : memref<1x8x32xf32, #tpu.memory_space<vmem>>, vector<1x8x32xf32>,
    return
  }
  func.func @transform_0(%arg0: i32, %arg1: i32) -> (i32, i32, i32, i32) {
    %c0_i32 = arith.constant 0 : i32
    %c0_i32_0 = arith.constant 0 : i32
    %c0_i32_1 = arith.constant 0 : i32
    return %arg0, %arg1, %c0_i32, %c0_i32_0 : i32, i32, i32, i32
  }
  func.func @transform_1(%arg0: i32, %arg1: i32) -> (i32, i32) {
    %c0_i32 = arith.constant 0 : i32
    %c0_i32_0 = arith.constant 0 : i32
    %c0_i32_1 = arith.constant 0 : i32
    return %c0_i32, %c0_i32_0 : i32, i32
  }
  func.func @transform_2(%arg0: i32, %arg1: i32) -> (i32, i32, i32) {
    %c0_i32 = arith.constant 0 : i32
    %c0_i32_0 = arith.constant 0 : i32
    return %arg0, %arg1, %c0_i32 : i32, i32, i32
  }
}

</mosaic_0001>

<llo_original>
// kernel: tpu_custom_call.1
$region0: #{tpu_custom_call.1}
  #allocation0 [shape = 'u32[]', space=smem, size = 0x4, offset = 0x4, fixed_abs, tag = 'smem constant byte address 0x4 - core index']
  #allocation1 [shape = 'u32[144,128]{1,0:T(1,128)}', space=vmem, size = 0x12000, scoped, tag = 'internal scratch']
  %s0 = inlined_call_operand.hbm [shape: f32[2,8,4,32], index: 0, kind: input, shape index: {}]
  %s1 = inlined_call_operand.hbm [shape: f32[32,32], index: 1, kind: input, shape index: {}]
  %s2 = inlined_call_operand.hbm [shape: f32[2,8,32], index: 2, kind: output, shape index: {}]
  %s3 = sld [smem:[#allocation0]]
  $region49: #{tpu_custom_call.1} parent=0
    _
  %s5 = ssub.s32 1, %s3
  %s6 = scalar_select 0, %s5, %s3
  $region1: #{tpu_custom_call.1} parent=0
    #allocation2 [shape = 'u8[32768]{0}', space=vmem, size = 0x8000, scoped, tag = 'input window, operand 0']
    #allocation3 [shape = 's32[2]{0}', space=sflag, size = 0x8, scoped, tag = 'scoped memory for tpu_custom_call.1']
    #allocation4 [shape = 's32[2]{0}', space=sflag, size = 0x8, scoped, tag = 'scoped memory for tpu_custom_call.1']
    #allocation5 [shape = 'u8[16384]{0}', space=vmem, size = 0x4000, scoped, tag = 'input window, operand 1, single buffered']
    #allocation6 [shape = 's32[1]{0}', space=sflag, size = 0x4, scoped, tag = 'scoped memory for tpu_custom_call.1']
    #allocation7 [shape = 'u8[8192]{0}', space=vmem, size = 0x2000, scoped, tag = 'output window, operand 0']
    %7 = vsyncpa [#allocation3], 0
    %s8 = scalar_lea.sflag [#allocation3], 1
    %9 = vsyncpa %s8, 0
    %10 = vsyncpa [#allocation6], 0
    %11 = vsyncpa [#allocation4], 0
    %s12 = scalar_lea.sflag [#allocation4], 1
    %13 = vsyncpa %s12, 0
    loop: start=0, step=1, limit=4
    $region2: #{tpu_custom_call.1} parent=1 // loop_pre_header
      _
    $region3: #{tpu_custom_call.1} parent=1 // loop_header
      %s15 = sphi 0, %s19
      %p16 = scmp.ge.s32.totalorder %s15, 4
      %s22 = sphi 0, %s34
      %s23 = sphi 0, %s30
      %s24 = sphi 0, %s22
      %s25 = sphi 0, %s23
      %s26 = sphi 0, %s24
      %s27 = sphi 0, %s25
      %s39 = sphi 0, %s41
      %s42 = sphi 0, %s39
      %s43 = sphi 0, %s42
      %s59 = sphi 0, %s43
      %s63 = sphi 0, %s63
      %s65 = sphi 0, %s63
      %s66 = sphi 0, %s65
      %s80 = sphi 0, %s66
      %s88 = sphi 0, %s90
      %s91 = sphi 0, %s88
      %s92 = sphi 0, %s91
      %s108 = sphi 0, %s92
    $region4: #{tpu_custom_call.1} parent=1 // loop_header_branch
      %18 = sbr.rel (%p16) target = $region8
    $region5: #{tpu_custom_call.1} parent=1 // loop_body
      %s20 = ssub.s32 %s15, 1
      %s21 = ssub.s32 %s15, 2
      %s28 = sadd.s32 1, %s23
      %p29 = scmp.ge.s32.totalorder %s28, 1
      %s30 = scalar_select %p29, 0, %s28
      %s31 = sadd.s32 1, %s22
      %s32 = scalar_select %p29, %s31, %s22
      %p33 = scmp.ge.s32.totalorder %s32, 2
      %s34 = scalar_select %p33, 0, %s32
      %s35 = ssub.s32 %s22, %s34
      %s36 = ssub.s32 %s23, %s30
      %s37 = sor.u32 %s35, %s36
      %p38 = scmp.eq.s32.totalorder %s37, 0
      %s40 = sadd.s32 %s39, 1
      %s41 = scalar_select %p38, %s39, %s40
      %p44 = pneg %p38
      %p45 = scmp.eq.s32.totalorder %s15, 1
      %p46 = por %p44, %p45
      %p47 = scmp.ne.s32.totalorder %s39, %s42
      %p48 = scmp.eq.s32.totalorder %s15, 0
      %p49 = por %p47, %p48
      %p50 = scmp.ne.s32.totalorder %s39, %s42
      %p51 = scmp.eq.s32.totalorder %s20, 1
      %p52 = por %p50, %p51
      %p53 = scmp.ne.s32.totalorder %s42, %s43
      %p54 = scmp.eq.s32.totalorder %s20, 0
      %p55 = por %p53, %p54
      %p56 = scmp.ne.s32.totalorder %s42, %s43
      %p57 = scmp.eq.s32.totalorder %s21, 1
      %p58 = por %p56, %p57
      %p60 = scmp.ne.s32.totalorder %s43, %s59
      %p61 = scmp.eq.s32.totalorder %s21, 0
      %p62 = por %p60, %p61
      %s64 = sadd.s32 %s63, 1
      %p67 = scmp.eq.s32.totalorder %s15, 1
      %p68 = scmp.ne.s32.totalorder %s63, %s65
      %p69 = scmp.eq.s32.totalorder %s15, 0
      %p70 = por %p68, %p69
      %p71 = scmp.ne.s32.totalorder %s63, %s65
      %p72 = scmp.eq.s32.totalorder %s20, 1
      %p73 = por %p71, %p72
      %p74 = scmp.ne.s32.totalorder %s65, %s66
      %p75 = scmp.eq.s32.totalorder %s20, 0
      %p76 = por %p74, %p75
      %p77 = scmp.ne.s32.totalorder %s65, %s66
      %p78 = scmp.eq.s32.totalorder %s21, 1
      %p79 = por %p77, %p78
      %p81 = scmp.ne.s32.totalorder %s66, %s80
      %p82 = scmp.eq.s32.totalorder %s21, 0
      %p83 = por %p81, %p82
      %s84 = ssub.s32 %s22, %s34
      %s85 = ssub.s32 %s23, %s30
      %s86 = sor.u32 %s84, %s85
      %p87 = scmp.eq.s32.totalorder %s86, 0
      %s89 = sadd.s32 %s88, 1
      %s90 = scalar_select %p87, %s88, %s89
      %p93 = pneg %p87
      %p94 = scmp.eq.s32.totalorder %s15, 1
      %p95 = por %p93, %p94
      %p96 = scmp.ne.s32.totalorder %s88, %s91
      %p97 = scmp.eq.s32.totalorder %s15, 0
      %p98 = por %p96, %p97
      %p99 = scmp.ne.s32.totalorder %s88, %s91
      %p100 = scmp.eq.s32.totalorder %s20, 1
      %p101 = por %p99, %p100
      %p102 = scmp.ne.s32.totalorder %s91, %s92
      %p103 = scmp.eq.s32.totalorder %s20, 0
      %p104 = por %p102, %p103
      %p105 = scmp.ne.s32.totalorder %s91, %s92
      %p106 = scmp.eq.s32.totalorder %s21, 1
      %p107 = por %p105, %p106
      %p109 = scmp.ne.s32.totalorder %s92, %s108
      %p110 = scmp.eq.s32.totalorder %s21, 0
      %p111 = por %p109, %p110
      %p112 = scmp.le.s32.totalorder 1, %s15
      %p113 = scmp.lt.s32.totalorder %s15, 3
      %p114 = pnand %p112, %p113
      %p115 = pneg %p114
      // Predicated region
      $region9: #{tpu_custom_call.1} parent=5 // pred_check
        _
      $region10: #{tpu_custom_call.1} parent=5 // pred_check_branch
        %117 = sbr.rel (%p114) target = $region12
      $region11: #{tpu_custom_call.1} parent=5 // pred_region
        %s118 = ssub.s32 %s15, 1
        // Predicated region
        $region13: #{tpu_custom_call.1} parent=11 // pred_check
          %p119 = pneg %p76
        $region14: #{tpu_custom_call.1} parent=11 // pred_check_branch
          %121 = sbr.rel (%p119) target = $region16
        $region15: #{tpu_custom_call.1} parent=11 // pred_region
          %s123 = ssub.s32 512, 512
          %124 = vsyncadd [#allocation6], %s123
          %s125 = sshll.u32 [#allocation5], 4
          %s126 = int_to_ptr.vmem [resolvable:$true] %s125
          %131 = dma.hbm_to_vmem [thread:$0]  %s1, 512, %s126, [#allocation6], 128, 128, 8
        $region16: #{tpu_custom_call.1} parent=11 // pred_fallthru
          _
      $region12: #{tpu_custom_call.1} parent=5 // pred_fallthru
        _
      %p132 = scmp.lt.s32.totalorder %s15, 2
      // Predicated region
      $region17: #{tpu_custom_call.1} parent=5 // pred_check
        %p133 = pneg %p132
      $region18: #{tpu_custom_call.1} parent=5 // pred_check_branch
        %135 = sbr.rel (%p133) target = $region20
      $region19: #{tpu_custom_call.1} parent=5 // pred_region
        // Predicated region
        $region21: #{tpu_custom_call.1} parent=19 // pred_check
          %p136 = pneg %p49
        $region22: #{tpu_custom_call.1} parent=19 // pred_check_branch
          %138 = sbr.rel (%p136) target = $region24
        $region23: #{tpu_custom_call.1} parent=19 // pred_region
          %s139 = sand.u32 %s39, 1
          %s140 = scalar_lea.sflag [#allocation3], %s139
          %s141 = sand.u32 %s39, 1
          %s142 = smul.addr %s141, 32
          %s143 = scalar_lea.vmem [#allocation2], %s142
          %s144 = smul.u32 8, %s23
          %s146 = ssub.s32 512, 512
          %147 = vsyncadd %s140, %s146
          %s148 = smul.addr %s22, 8
          %s149 = sadd.s32 %s144, %s148
          %s150 = smul.addr %s149, 64
          %s151 = scalar_lea.hbm %s0, %s150
          %s152 = sshll.u32 %s143, 4
          %s153 = int_to_ptr.vmem [resolvable:$true] %s152
          %158 = dma.hbm_to_vmem [thread:$0]  %s151, 512, %s153, %s140, 64, 64, 4
        $region24: #{tpu_custom_call.1} parent=19 // pred_fallthru
          _
      $region20: #{tpu_custom_call.1} parent=5 // pred_fallthru
        _
      %p159 = scmp.le.s32.totalorder 1, %s15
      %p160 = scmp.lt.s32.totalorder %s15, 3
      %p161 = pnand %p159, %p160
      %p162 = pneg %p161
      // Predicated region
      $region25: #{tpu_custom_call.1} parent=5 // pred_check
        _
      $region26: #{tpu_custom_call.1} parent=5 // pred_check_branch
        %164 = sbr.rel (%p161) target = $region28
      $region27: #{tpu_custom_call.1} parent=5 // pred_region
        %s165 = ssub.s32 %s15, 1
        %s166 = sand.u32 %s42, 1
        %s167 = scalar_lea.sflag [#allocation3], %s166
        %s168 = sand.u32 %s42, 1
        %s169 = smul.addr %s168, 32
        %s170 = scalar_lea.vmem [#allocation2], %s169
        // Predicated region
        $region29: #{tpu_custom_call.1} parent=27 // pred_check
          %p171 = pneg %p55
        $region30: #{tpu_custom_call.1} parent=27 // pred_check_branch
          %173 = sbr.rel (%p171) target = $region32
        $region31: #{tpu_custom_call.1} parent=27 // pred_region
          %174 = dma.done %s167, 512
        $region32: #{tpu_custom_call.1} parent=27 // pred_fallthru
          _
        // Predicated region
        $region33: #{tpu_custom_call.1} parent=27 // pred_check
          %p175 = pneg %p76
        $region34: #{tpu_custom_call.1} parent=27 // pred_check_branch
          %177 = sbr.rel (%p175) target = $region36
        $region35: #{tpu_custom_call.1} parent=27 // pred_region
          %178 = dma.done [#allocation6], 512
        $region36: #{tpu_custom_call.1} parent=27 // pred_fallthru
          _
        %s179 = sand.u32 %s42, 1
        %s180 = scalar_lea.sflag [#allocation3], %s179
        %s181 = sand.u32 %s42, 1
        %s182 = smul.addr %s181, 32
        %s183 = scalar_lea.vmem [#allocation2], %s182
        %p184 = pneg %p55
        %p185 = pneg %p52
        %p186 = pneg %p76
        %p187 = pneg %p73
        %p188 = pneg %p104
        %p189 = pneg %p101
        %s190 = sand.u32 %s91, 1
        %s191 = scalar_lea.sflag [#allocation4], %s190
        %s192 = sand.u32 %s91, 1
        %s193 = smul.addr %s192, 8
        %s194 = scalar_lea.vmem [#allocation7], %s193
        %s195 = smul.u32 8, %s25
        %v196 = vld [vmem:[#allocation5] sm:$0xff]
        %v197 = vld [vmem:[#allocation5 + $0x8] sm:$0xff]
        %v198 = vld [vmem:[#allocation5 + $0x10] sm:$0xff]
        %v199 = vld [vmem:[#allocation5 + $0x18] sm:$0xff]
        %v200 = vld [vmem:[%s170] sm:$0x1]
        %v201 = vld [vmem:[%s170 + $0x4] sm:$0x1]
        %v202 = vld [vmem:[%s170 + $0x8] sm:$0x1]
        %v203 = vld [vmem:[%s170 + $0xc] sm:$0x1]
        %v204 = vld [vmem:[%s170 + $0x10] sm:$0x1]
        %v205 = vld [vmem:[%s170 + $0x14] sm:$0x1]
        %v206 = vld [vmem:[%s170 + $0x18] sm:$0x1]
        %v207 = vld [vmem:[%s170 + $0x1c] sm:$0x1]
        %v208 = vld [vmem:[%s170 + $0x1] sm:$0x1]
        %v209 = vld [vmem:[%s170 + $0x5] sm:$0x1]
        %v210 = vld [vmem:[%s170 + $0x9] sm:$0x1]
        %v211 = vld [vmem:[%s170 + $0xd] sm:$0x1]
        %v212 = vld [vmem:[%s170 + $0x11] sm:$0x1]
        %v213 = vld [vmem:[%s170 + $0x15] sm:$0x1]
        %v214 = vld [vmem:[%s170 + $0x19] sm:$0x1]
        %v215 = vld [vmem:[%s170 + $0x1d] sm:$0x1]
        %v216 = vld [vmem:[%s170 + $0x2] sm:$0x1]
        %v217 = vld [vmem:[%s170 + $0x6] sm:$0x1]
        %v218 = vld [vmem:[%s170 + $0xa] sm:$0x1]
        %v219 = vld [vmem:[%s170 + $0xe] sm:$0x1]
        %v220 = vld [vmem:[%s170 + $0x12] sm:$0x1]
        %v221 = vld [vmem:[%s170 + $0x16] sm:$0x1]
        %v222 = vld [vmem:[%s170 + $0x1a] sm:$0x1]
        %v223 = vld [vmem:[%s170 + $0x1e] sm:$0x1]
        %v224 = vld [vmem:[%s170 + $0x3] sm:$0x1]
        %v225 = vld [vmem:[%s170 + $0x7] sm:$0x1]
        %v226 = vld [vmem:[%s170 + $0xb] sm:$0x1]
        %v227 = vld [vmem:[%s170 + $0xf] sm:$0x1]
        %v228 = vld [vmem:[%s170 + $0x13] sm:$0x1]
        %v229 = vld [vmem:[%s170 + $0x17] sm:$0x1]
        %v230 = vld [vmem:[%s170 + $0x1b] sm:$0x1]
        %v231 = vld [vmem:[%s170 + $0x1f] sm:$0x1]
        %v240 = vrot.slane %v201, 7
        %vm241 = vcmask 1041409
        %v242 = vsel %vm241, %v240, %v200
        %v243 = vrot.slane %v202, 6
        %vm244 = vcmask 1042434
        %v245 = vsel %vm244, %v243, %v242
        %v246 = vrot.slane %v203, 5
        %vm247 = vcmask 1043459
        %v248 = vsel %vm247, %v246, %v245
        %v249 = vrot.slane %v204, 4
        %vm250 = vcmask 1044484
        %v251 = vsel %vm250, %v249, %v248
        %v252 = vrot.slane %v205, 3
        %vm253 = vcmask 1045509
        %v254 = vsel %vm253, %v252, %v251
        %v255 = vrot.slane %v206, 2
        %vm256 = vcmask 1046534
        %v257 = vsel %vm256, %v255, %v254
        %v258 = vrot.slane %v207, 1
        %vm259 = vcmask 1047559
        %v260 = vsel %vm259, %v258, %v257
        %vm261 = vcmask 261120
        %v262 = vsel %vm261, %v260, 0
        %264 = vmatprep.subr.mxu0 0.0
        %265 = vmatpush1.msra.mxu0 %v196
        %266 = vmatprep.subr.mxu0 0.0
        %267 = vmatpush1.msra.mxu0 %v197
        %268 = vmatprep.subr.mxu0 0.0
        %269 = vmatpush1.msra.mxu0 %v198
        %270 = vmatprep.subr.mxu0 0.0
        %271 = vmatpush1.msra.mxu0 %v199
        %272 = vmatprep.subr.mxu0 0.0
        %273 = vmatpush1.msra.mxu0 0.0
        %274 = vmatprep.subr.mxu0 0.0
        %275 = vmatpush1.msra.mxu0 0.0
        %276 = vmatprep.subr.mxu0 0.0
        %277 = vmatpush1.msra.mxu0 0.0
        %278 = vmatprep.subr.mxu0 0.0
        %279 = vmatpush1.msra.mxu0 0.0
        %280 = vmatprep.subr.mxu0 0.0
        %281 = vmatpush1.msra.mxu0 0.0
        %282 = vmatprep.subr.mxu0 0.0
        %283 = vmatpush1.msra.mxu0 0.0
        %284 = vmatprep.subr.mxu0 0.0
        %285 = vmatpush1.msra.mxu0 0.0
        %286 = vmatprep.subr.mxu0 0.0
        %287 = vmatpush1.msra.mxu0 0.0
        %288 = vmatprep.subr.mxu0 0.0
        %289 = vmatpush1.msra.mxu0 0.0
        %290 = vmatprep.subr.mxu0 0.0
        %291 = vmatpush1.msra.mxu0 0.0
        %292 = vmatprep.subr.mxu0 0.0
        %293 = vmatpush1.msra.mxu0 0.0
        %294 = vmatprep.subr.mxu0 0.0
        %295 = vmatpush1.msra.mxu0 0.0
        %296 = vmatprep.subr.mxu0 0.0
        %297 = vmatpush1.msra.mxu0 0.0
        %298 = vmatprep.subr.mxu0 0.0
        %299 = vmatpush1.msra.mxu0 0.0
        %300 = vmatprep.subr.mxu0 0.0
        %301 = vmatpush1.msra.mxu0 0.0
        %302 = vmatprep.subr.mxu0 0.0
        %303 = vmatpush1.msra.mxu0 0.0
        %304 = vmatprep.subr.mxu0 0.0
        %305 = vmatpush1.msra.mxu0 0.0
        %306 = vmatprep.subr.mxu0 0.0
        %307 = vmatpush1.msra.mxu0 0.0
        %308 = vmatprep.subr.mxu0 0.0
        %309 = vmatpush1.msra.mxu0 0.0
        %310 = vmatprep.subr.mxu0 0.0
        %311 = vmatpush1.msra.mxu0 0.0
        %312 = vmatprep.subr.mxu0 0.0
        %313 = vmatpush1.msra.mxu0 0.0
        %314 = vmatprep.subr.mxu0 0.0
        %315 = vmatpush1.msra.mxu0 0.0
        %316 = vmatprep.subr.mxu0 0.0
        %317 = vmatpush1.msra.mxu0 0.0
        %318 = vmatprep.subr.mxu0 0.0
        %319 = vmatpush1.msra.mxu0 0.0
        %320 = vmatprep.subr.mxu0 0.0
        %321 = vmatpush1.msra.mxu0 0.0
        %322 = vmatprep.subr.mxu0 0.0
        %323 = vmatpush1.msra.mxu0 0.0
        %324 = vmatprep.subr.mxu0 0.0
        %325 = vmatpush1.msra.mxu0 0.0
        %326 = vmatprep.subr.mxu0 0.0
        %327 = vmatpush1.msra.mxu0 0.0
        %328 = vmatprep.mubr.f32.mxu0 0.0
        %329 = vmatmul.mubr.f32.gmra.mrb[0].mxu0 %v262
        %v330 = vpop.f32.mrb[0].mxu0
        %v331 = vadd.f32 0.0, %v330
        %v332 = vpop.f32.mrb[0].mxu0
        %333 = vdwg.mxu0
        %v342 = vrot.slane %v209, 7
        %v343 = vsel %vm241, %v342, %v208
        %v344 = vrot.slane %v210, 6
        %v345 = vsel %vm244, %v344, %v343
        %v346 = vrot.slane %v211, 5
        %v347 = vsel %vm247, %v346, %v345
        %v348 = vrot.slane %v212, 4
        %v349 = vsel %vm250, %v348, %v347
        %v350 = vrot.slane %v213, 3
        %v351 = vsel %vm253, %v350, %v349
        %v352 = vrot.slane %v214, 2
        %v353 = vsel %vm256, %v352, %v351
        %v354 = vrot.slane %v215, 1
        %v355 = vsel %vm259, %v354, %v353
        %v356 = vsel %vm261, %v355, 0
        %358 = vmatprep.subr.mxu0 0.0
        %359 = vmatpush1.msra.mxu0 %v196
        %360 = vmatprep.subr.mxu0 0.0
        %361 = vmatpush1.msra.mxu0 %v197
        %362 = vmatprep.subr.mxu0 0.0
        %363 = vmatpush1.msra.mxu0 %v198
        %364 = vmatprep.subr.mxu0 0.0
        %365 = vmatpush1.msra.mxu0 %v199
        %366 = vmatprep.subr.mxu0 0.0
        %367 = vmatpush1.msra.mxu0 0.0
        %368 = vmatprep.subr.mxu0 0.0
        %369 = vmatpush1.msra.mxu0 0.0
        %370 = vmatprep.subr.mxu0 0.0
        %371 = vmatpush1.msra.mxu0 0.0
        %372 = vmatprep.subr.mxu0 0.0
        %373 = vmatpush1.msra.mxu0 0.0
        %374 = vmatprep.subr.mxu0 0.0
        %375 = vmatpush1.msra.mxu0 0.0
        %376 = vmatprep.subr.mxu0 0.0
        %377 = vmatpush1.msra.mxu0 0.0
        %378 = vmatprep.subr.mxu0 0.0
        %379 = vmatpush1.msra.mxu0 0.0
        %380 = vmatprep.subr.mxu0 0.0
        %381 = vmatpush1.msra.mxu0 0.0
        %382 = vmatprep.subr.mxu0 0.0
        %383 = vmatpush1.msra.mxu0 0.0
        %384 = vmatprep.subr.mxu0 0.0
        %385 = vmatpush1.msra.mxu0 0.0
        %386 = vmatprep.subr.mxu0 0.0
        %387 = vmatpush1.msra.mxu0 0.0
        %388 = vmatprep.subr.mxu0 0.0
        %389 = vmatpush1.msra.mxu0 0.0
        %390 = vmatprep.subr.mxu0 0.0
        %391 = vmatpush1.msra.mxu0 0.0
        %392 = vmatprep.subr.mxu0 0.0
        %393 = vmatpush1.msra.mxu0 0.0
        %394 = vmatprep.subr.mxu0 0.0
        %395 = vmatpush1.msra.mxu0 0.0
        %396 = vmatprep.subr.mxu0 0.0
        %397 = vmatpush1.msra.mxu0 0.0
        %398 = vmatprep.subr.mxu0 0.0
        %399 = vmatpush1.msra.mxu0 0.0
        %400 = vmatprep.subr.mxu0 0.0
        %401 = vmatpush1.msra.mxu0 0.0
        %402 = vmatprep.subr.mxu0 0.0
        %403 = vmatpush1.msra.mxu0 0.0
        %404 = vmatprep.subr.mxu0 0.0
        %405 = vmatpush1.msra.mxu0 0.0
        %406 = vmatprep.subr.mxu0 0.0
        %407 = vmatpush1.msra.mxu0 0.0
        %408 = vmatprep.subr.mxu0 0.0
        %409 = vmatpush1.msra.mxu0 0.0
        %410 = vmatprep.subr.mxu0 0.0
        %411 = vmatpush1.msra.mxu0 0.0
        %412 = vmatprep.subr.mxu0 0.0
        %413 = vmatpush1.msra.mxu0 0.0
        %414 = vmatprep.subr.mxu0 0.0
        %415 = vmatpush1.msra.mxu0 0.0
        %416 = vmatprep.subr.mxu0 0.0
        %417 = vmatpush1.msra.mxu0 0.0
        %418 = vmatprep.subr.mxu0 0.0
        %419 = vmatpush1.msra.mxu0 0.0
        %420 = vmatprep.subr.mxu0 0.0
        %421 = vmatpush1.msra.mxu0 0.0
        %422 = vmatprep.mubr.f32.mxu0 0.0
        %423 = vmatmul.mubr.f32.gmra.mrb[0].mxu0 %v356
        %v424 = vpop.f32.mrb[0].mxu0
        %v425 = vadd.f32 0.0, %v424
        %v426 = vpop.f32.mrb[0].mxu0
        %427 = vdwg.mxu0
        %v428 = vmax.f32 %v331, %v425
        %v437 = vrot.slane %v217, 7
        %v438 = vsel %vm241, %v437, %v216
        %v439 = vrot.slane %v218, 6
        %v440 = vsel %vm244, %v439, %v438
        %v441 = vrot.slane %v219, 5
        %v442 = vsel %vm247, %v441, %v440
        %v443 = vrot.slane %v220, 4
        %v444 = vsel %vm250, %v443, %v442
        %v445 = vrot.slane %v221, 3
        %v446 = vsel %vm253, %v445, %v444
        %v447 = vrot.slane %v222, 2
        %v448 = vsel %vm256, %v447, %v446
        %v449 = vrot.slane %v223, 1
        %v450 = vsel %vm259, %v449, %v448
        %v451 = vsel %vm261, %v450, 0
        %453 = vmatprep.subr.mxu0 0.0
        %454 = vmatpush1.msra.mxu0 %v196
        %455 = vmatprep.subr.mxu0 0.0
        %456 = vmatpush1.msra.mxu0 %v197
        %457 = vmatprep.subr.mxu0 0.0
        %458 = vmatpush1.msra.mxu0 %v198
        %459 = vmatprep.subr.mxu0 0.0
        %460 = vmatpush1.msra.mxu0 %v199
        %461 = vmatprep.subr.mxu0 0.0
        %462 = vmatpush1.msra.mxu0 0.0
        %463 = vmatprep.subr.mxu0 0.0
        %464 = vmatpush1.msra.mxu0 0.0
        %465 = vmatprep.subr.mxu0 0.0
        %466 = vmatpush1.msra.mxu0 0.0
        %467 = vmatprep.subr.mxu0 0.0
        %468 = vmatpush1.msra.mxu0 0.0
        %469 = vmatprep.subr.mxu0 0.0
        %470 = vmatpush1.msra.mxu0 0.0
        %471 = vmatprep.subr.mxu0 0.0
        %472 = vmatpush1.msra.mxu0 0.0
        %473 = vmatprep.subr.mxu0 0.0
        %474 = vmatpush1.msra.mxu0 0.0
        %475 = vmatprep.subr.mxu0 0.0
        %476 = vmatpush1.msra.mxu0 0.0
        %477 = vmatprep.subr.mxu0 0.0
        %478 = vmatpush1.msra.mxu0 0.0
        %479 = vmatprep.subr.mxu0 0.0
        %480 = vmatpush1.msra.mxu0 0.0
        %481 = vmatprep.subr.mxu0 0.0
        %482 = vmatpush1.msra.mxu0 0.0
        %483 = vmatprep.subr.mxu0 0.0
        %484 = vmatpush1.msra.mxu0 0.0
        %485 = vmatprep.subr.mxu0 0.0
        %486 = vmatpush1.msra.mxu0 0.0
        %487 = vmatprep.subr.mxu0 0.0
        %488 = vmatpush1.msra.mxu0 0.0
        %489 = vmatprep.subr.mxu0 0.0
        %490 = vmatpush1.msra.mxu0 0.0
        %491 = vmatprep.subr.mxu0 0.0
        %492 = vmatpush1.msra.mxu0 0.0
        %493 = vmatprep.subr.mxu0 0.0
        %494 = vmatpush1.msra.mxu0 0.0
        %495 = vmatprep.subr.mxu0 0.0
        %496 = vmatpush1.msra.mxu0 0.0
        %497 = vmatprep.subr.mxu0 0.0
        %498 = vmatpush1.msra.mxu0 0.0
        %499 = vmatprep.subr.mxu0 0.0
        %500 = vmatpush1.msra.mxu0 0.0
        %501 = vmatprep.subr.mxu0 0.0
        %502 = vmatpush1.msra.mxu0 0.0
        %503 = vmatprep.subr.mxu0 0.0
        %504 = vmatpush1.msra.mxu0 0.0
        %505 = vmatprep.subr.mxu0 0.0
        %506 = vmatpush1.msra.mxu0 0.0
        %507 = vmatprep.subr.mxu0 0.0
        %508 = vmatpush1.msra.mxu0 0.0
        %509 = vmatprep.subr.mxu0 0.0
        %510 = vmatpush1.msra.mxu0 0.0
        %511 = vmatprep.subr.mxu0 0.0
        %512 = vmatpush1.msra.mxu0 0.0
        %513 = vmatprep.subr.mxu0 0.0
        %514 = vmatpush1.msra.mxu0 0.0
        %515 = vmatprep.subr.mxu0 0.0
        %516 = vmatpush1.msra.mxu0 0.0
        %517 = vmatprep.mubr.f32.mxu0 0.0
        %518 = vmatmul.mubr.f32.gmra.mrb[0].mxu0 %v451
        %v519 = vpop.f32.mrb[0].mxu0
        %v520 = vadd.f32 0.0, %v519
        %v521 = vpop.f32.mrb[0].mxu0
        %522 = vdwg.mxu0
        %v523 = vmax.f32 %v428, %v520
        %v532 = vrot.slane %v225, 7
        %v533 = vsel %vm241, %v532, %v224
        %v534 = vrot.slane %v226, 6
        %v535 = vsel %vm244, %v534, %v533
        %v536 = vrot.slane %v227, 5
        %v537 = vsel %vm247, %v536, %v535
        %v538 = vrot.slane %v228, 4
        %v539 = vsel %vm250, %v538, %v537
        %v540 = vrot.slane %v229, 3
        %v541 = vsel %vm253, %v540, %v539
        %v542 = vrot.slane %v230, 2
        %v543 = vsel %vm256, %v542, %v541
        %v544 = vrot.slane %v231, 1
        %v545 = vsel %vm259, %v544, %v543
        %v546 = vsel %vm261, %v545, 0
        %548 = vmatprep.subr.mxu0 0.0
        %549 = vmatpush1.msra.mxu0 %v196
        %550 = vmatprep.subr.mxu0 0.0
        %551 = vmatpush1.msra.mxu0 %v197
        %552 = vmatprep.subr.mxu0 0.0
        %553 = vmatpush1.msra.mxu0 %v198
        %554 = vmatprep.subr.mxu0 0.0
        %555 = vmatpush1.msra.mxu0 %v199
        %556 = vmatprep.subr.mxu0 0.0
        %557 = vmatpush1.msra.mxu0 0.0
        %558 = vmatprep.subr.mxu0 0.0
        %559 = vmatpush1.msra.mxu0 0.0
        %560 = vmatprep.subr.mxu0 0.0
        %561 = vmatpush1.msra.mxu0 0.0
        %562 = vmatprep.subr.mxu0 0.0
        %563 = vmatpush1.msra.mxu0 0.0
        %564 = vmatprep.subr.mxu0 0.0
        %565 = vmatpush1.msra.mxu0 0.0
        %566 = vmatprep.subr.mxu0 0.0
        %567 = vmatpush1.msra.mxu0 0.0
        %568 = vmatprep.subr.mxu0 0.0
        %569 = vmatpush1.msra.mxu0 0.0
        %570 = vmatprep.subr.mxu0 0.0
        %571 = vmatpush1.msra.mxu0 0.0
        %572 = vmatprep.subr.mxu0 0.0
        %573 = vmatpush1.msra.mxu0 0.0
        %574 = vmatprep.subr.mxu0 0.0
        %575 = vmatpush1.msra.mxu0 0.0
        %576 = vmatprep.subr.mxu0 0.0
        %577 = vmatpush1.msra.mxu0 0.0
        %578 = vmatprep.subr.mxu0 0.0
        %579 = vmatpush1.msra.mxu0 0.0
        %580 = vmatprep.subr.mxu0 0.0
        %581 = vmatpush1.msra.mxu0 0.0
        %582 = vmatprep.subr.mxu0 0.0
        %583 = vmatpush1.msra.mxu0 0.0
        %584 = vmatprep.subr.mxu0 0.0
        %585 = vmatpush1.msra.mxu0 0.0
        %586 = vmatprep.subr.mxu0 0.0
        %587 = vmatpush1.msra.mxu0 0.0
        %588 = vmatprep.subr.mxu0 0.0
        %589 = vmatpush1.msra.mxu0 0.0
        %590 = vmatprep.subr.mxu0 0.0
        %591 = vmatpush1.msra.mxu0 0.0
        %592 = vmatprep.subr.mxu0 0.0
        %593 = vmatpush1.msra.mxu0 0.0
        %594 = vmatprep.subr.mxu0 0.0
        %595 = vmatpush1.msra.mxu0 0.0
        %596 = vmatprep.subr.mxu0 0.0
        %597 = vmatpush1.msra.mxu0 0.0
        %598 = vmatprep.subr.mxu0 0.0
        %599 = vmatpush1.msra.mxu0 0.0
        %600 = vmatprep.subr.mxu0 0.0
        %601 = vmatpush1.msra.mxu0 0.0
        %602 = vmatprep.subr.mxu0 0.0
        %603 = vmatpush1.msra.mxu0 0.0
        %604 = vmatprep.subr.mxu0 0.0
        %605 = vmatpush1.msra.mxu0 0.0
        %606 = vmatprep.subr.mxu0 0.0
        %607 = vmatpush1.msra.mxu0 0.0
        %608 = vmatprep.subr.mxu0 0.0
        %609 = vmatpush1.msra.mxu0 0.0
        %610 = vmatprep.subr.mxu0 0.0
        %611 = vmatpush1.msra.mxu0 0.0
        %612 = vmatprep.mubr.f32.mxu0 0.0
        %613 = vmatmul.mubr.f32.gmra.mrb[0].mxu0 %v546
        %v614 = vpop.f32.mrb[0].mxu0
        %v615 = vadd.f32 0.0, %v614
        %v616 = vpop.f32.mrb[0].mxu0
        %617 = vdwg.mxu0
        %v618 = vmax.f32 %v523, %v615
        %v619 = vsub.f32 %v331, %v618
        %v620 = vmul.f32 %v619, 1.442695
        %v621 = vpow.pop %v620
        %v623 = vrot.slane %v621, 1
        %v624 = vrot.slane %v621, 2
        %v625 = vrot.slane %v621, 3
        %v626 = vrot.slane %v621, 4
        %v627 = vrot.slane %v621, 5
        %v628 = vrot.slane %v621, 6
        %v629 = vrot.slane %v621, 7
        %v638 = vmul.f32 %v200, %v621
        %v639 = vmul.f32 %v201, %v623
        %v640 = vmul.f32 %v202, %v624
        %v641 = vmul.f32 %v203, %v625
        %v642 = vmul.f32 %v204, %v626
        %v643 = vmul.f32 %v205, %v627
        %v644 = vmul.f32 %v206, %v628
        %v645 = vmul.f32 %v207, %v629
        %v646 = vsub.f32 %v425, %v618
        %v647 = vmul.f32 %v646, 1.442695
        %v648 = vpow.pop %v647
        %v650 = vrot.slane %v648, 1
        %v651 = vrot.slane %v648, 2
        %v652 = vrot.slane %v648, 3
        %v653 = vrot.slane %v648, 4
        %v654 = vrot.slane %v648, 5
        %v655 = vrot.slane %v648, 6
        %v656 = vrot.slane %v648, 7
        %v665 = vmul.f32 %v208, %v648
        %v666 = vmul.f32 %v209, %v650
        %v667 = vmul.f32 %v210, %v651
        %v668 = vmul.f32 %v211, %v652
        %v669 = vmul.f32 %v212, %v653
        %v670 = vmul.f32 %v213, %v654
        %v671 = vmul.f32 %v214, %v655
        %v672 = vmul.f32 %v215, %v656
        %v673 = vadd.f32 %v621, %v648
        %v674 = vadd.f32 %v638, %v665
        %v675 = vadd.f32 %v639, %v666
        %v676 = vadd.f32 %v640, %v667
        %v677 = vadd.f32 %v641, %v668
        %v678 = vadd.f32 %v642, %v669
        %v679 = vadd.f32 %v643, %v670
        %v680 = vadd.f32 %v644, %v671
        %v681 = vadd.f32 %v645, %v672
        %v682 = vsub.f32 %v520, %v618
        %v683 = vmul.f32 %v682, 1.442695
        %v684 = vpow.pop %v683
        %v686 = vrot.slane %v684, 1
        %v687 = vrot.slane %v684, 2
        %v688 = vrot.slane %v684, 3
        %v689 = vrot.slane %v684, 4
        %v690 = vrot.slane %v684, 5
        %v691 = vrot.slane %v684, 6
        %v692 = vrot.slane %v684, 7
        %v701 = vmul.f32 %v216, %v684
        %v702 = vmul.f32 %v217, %v686
        %v703 = vmul.f32 %v218, %v687
        %v704 = vmul.f32 %v219, %v688
        %v705 = vmul.f32 %v220, %v689
        %v706 = vmul.f32 %v221, %v690
        %v707 = vmul.f32 %v222, %v691
        %v708 = vmul.f32 %v223, %v692
        %v709 = vadd.f32 %v673, %v684
        %v710 = vadd.f32 %v674, %v701
        %v711 = vadd.f32 %v675, %v702
        %v712 = vadd.f32 %v676, %v703
        %v713 = vadd.f32 %v677, %v704
        %v714 = vadd.f32 %v678, %v705
        %v715 = vadd.f32 %v679, %v706
        %v716 = vadd.f32 %v680, %v707
        %v717 = vadd.f32 %v681, %v708
        %v718 = vsub.f32 %v615, %v618
        %v719 = vmul.f32 %v718, 1.442695
        %v720 = vpow.pop %v719
        %v722 = vrot.slane %v720, 1
        %v723 = vrot.slane %v720, 2
        %v724 = vrot.slane %v720, 3
        %v725 = vrot.slane %v720, 4
        %v726 = vrot.slane %v720, 5
        %v727 = vrot.slane %v720, 6
        %v728 = vrot.slane %v720, 7
        %v737 = vmul.f32 %v224, %v720
        %v738 = vmul.f32 %v225, %v722
        %v739 = vmul.f32 %v226, %v723
        %v740 = vmul.f32 %v227, %v724
        %v741 = vmul.f32 %v228, %v725
        %v742 = vmul.f32 %v229, %v726
        %v743 = vmul.f32 %v230, %v727
        %v744 = vmul.f32 %v231, %v728
        %v745 = vadd.f32 %v709, %v720
        %v746 = vadd.f32 %v710, %v737
        %v747 = vadd.f32 %v711, %v738
        %v748 = vadd.f32 %v712, %v739
        %v749 = vadd.f32 %v713, %v740
        %v750 = vadd.f32 %v714, %v741
        %v751 = vadd.f32 %v715, %v742
        %v752 = vadd.f32 %v716, %v743
        %v753 = vadd.f32 %v717, %v744
        %v754 = vrcp.pop %v745
        %v756 = vrot.slane %v754, 1
        %v757 = vrot.slane %v754, 2
        %v758 = vrot.slane %v754, 3
        %v759 = vrot.slane %v754, 4
        %v760 = vrot.slane %v754, 5
        %v761 = vrot.slane %v754, 6
        %v762 = vrot.slane %v754, 7
        %v771 = vmul.f32 %v746, %v754
        %v772 = vmul.f32 %v747, %v756
        %v773 = vmul.f32 %v748, %v757
        %v774 = vmul.f32 %v749, %v758
        %v775 = vmul.f32 %v750, %v759
        %v776 = vmul.f32 %v751, %v760
        %v777 = vmul.f32 %v752, %v761
        %v778 = vmul.f32 %v753, %v762
        %v787 = vrot.slane %v772, 7
        %v788 = vsel %vm241, %v787, %v771
        %v789 = vrot.slane %v773, 6
        %v790 = vsel %vm244, %v789, %v788
        %v791 = vrot.slane %v774, 5
        %v792 = vsel %vm247, %v791, %v790
        %v793 = vrot.slane %v775, 4
        %v794 = vsel %vm250, %v793, %v792
        %v795 = vrot.slane %v776, 3
        %v796 = vsel %vm253, %v795, %v794
        %v797 = vrot.slane %v777, 2
        %v798 = vsel %vm256, %v797, %v796
        %v799 = vrot.slane %v778, 1
        %v800 = vsel %vm259, %v799, %v798
        %802 = vst.msk [vmem:[%s194] sm:$0xff] %vm261, %v800
        %s803 = sand.u32 %s91, 1
        %s804 = scalar_lea.sflag [#allocation4], %s803
        %s805 = sand.u32 %s91, 1
        %s806 = smul.addr %s805, 8
        %s807 = scalar_lea.vmem [#allocation7], %s806
        // Predicated region
        $region37: #{tpu_custom_call.1} parent=27 // pred_check
          %p808 = pneg %p101
        $region38: #{tpu_custom_call.1} parent=27 // pred_check_branch
          %810 = sbr.rel (%p808) target = $region40
        $region39: #{tpu_custom_call.1} parent=27 // pred_region
          %s812 = ssub.s32 128, 128
          %813 = vsyncadd %s804, %s812
          %s814 = sadd.s32 %s25, %s24
          %s815 = smul.addr %s814, 128
          %s816 = scalar_lea.hbm %s2, %s815
          %s818 = sshll.u32 %s807, 4
          %s819 = int_to_ptr.vmem [resolvable:$true] %s818
          %821 = dma.vmem_to_hbm [thread:$0]  %s819, 128, %s816, %s804
        $region40: #{tpu_custom_call.1} parent=27 // pred_fallthru
          _
      $region28: #{tpu_custom_call.1} parent=5 // pred_fallthru
        _
      %p822 = scmp.le.s32.totalorder 2, %s15
      // Predicated region
      $region41: #{tpu_custom_call.1} parent=5 // pred_check
        %p823 = pneg %p822
      $region42: #{tpu_custom_call.1} parent=5 // pred_check_branch
        %825 = sbr.rel (%p823) target = $region44
      $region43: #{tpu_custom_call.1} parent=5 // pred_region
        %s826 = ssub.s32 %s15, 2
        // Predicated region
        $region45: #{tpu_custom_call.1} parent=43 // pred_check
          %p827 = pneg %p107
        $region46: #{tpu_custom_call.1} parent=43 // pred_check_branch
          %829 = sbr.rel (%p827) target = $region48
        $region47: #{tpu_custom_call.1} parent=43 // pred_region
          %s830 = sand.u32 %s92, 1
          %s831 = scalar_lea.sflag [#allocation4], %s830
          %s832 = sand.u32 %s92, 1
          %s833 = smul.addr %s832, 8
          %s834 = scalar_lea.vmem [#allocation7], %s833
          %835 = dma.done %s831, 128
        $region48: #{tpu_custom_call.1} parent=43 // pred_fallthru
          _
      $region44: #{tpu_custom_call.1} parent=5 // pred_fallthru
        _
    $region6: #{tpu_custom_call.1} parent=1 // loop_footer
      %s19 = sadd.s32 1, %s15
    $region7: #{tpu_custom_call.1} parent=1 // loop_footer_branch
      %14 = sbr.rel target = $region3
    $region8: #{tpu_custom_call.1} parent=1 // loop_exit
      _
    %836 = vsyncpa [#allocation3], 1
    %s837 = scalar_lea.sflag [#allocation3], 1
    %838 = vsyncpa %s837, 1
    %839 = vsyncpa [#allocation6], 1
    %840 = vsyncpa [#allocation4], 1
    %s841 = scalar_lea.sflag [#allocation4], 1
    %842 = vsyncpa %s841, 1

</llo_original>
